<compile_context>
chip_gen: v5e
topology: v5e:2x2
jax: 0.10.0
libtpu: 0.0.40
codegen_flags: <defaults>
</compile_context>

<pallas_src>
import functools
import math

import jax
import jax.numpy as jnp
from jax import lax
from jax.experimental import pallas as pl
from jax.experimental.pallas import tpu as pltpu


def _fcblock_kernel(x_ref, *refs, out_dims, chunk):
    """refs = (w_0, ..., w_{L-1}, b_all, out_ref).

    x_ref:   (in_features, block_n)   batch on lanes, stream dtype (f32 or bf16)
    w_i:     (out_i, in_i)            PyTorch nn.Linear convention, no in-kernel transpose
    b_all:   (sum(out_i), 1) float32  stacked biases, sliced statically per layer
    out_ref: (out_features, block_n)
    """
    out_ref = refs[-1]
    b_all_ref = refs[-2]
    w_refs = refs[:-2]
    n_layers = len(w_refs)

    # Resident params: constant index maps keep them in VMEM across grid steps; load once.
    ws = [w_refs[i][...] for i in range(n_layers)]
    b_all = b_all_ref[...]
    offs = [0]
    for d in out_dims:
        offs.append(offs[-1] + int(d))
    bs = [b_all[offs[i]:offs[i + 1], :] for i in range(n_layers)]

    n_chunks = x_ref.shape[1] // chunk

    def body(c, carry):
        start = pl.multiple_of(c * chunk, chunk)
        h = x_ref[:, pl.ds(start, chunk)]
        for i in range(n_layers):
            acc = jnp.dot(ws[i], h, preferred_element_type=jnp.float32)   # MXU, f32 acc
            acc = acc + bs[i]                                             # f32 epilogue (v5e-safe)
            if i < n_layers - 1:
                acc = jnp.maximum(acc, 0.0)                               # ReLU (hidden nonlinearity)
                h = acc.astype(ws[i].dtype)                               # next MXU pass in stream dtype
            else:
                # Only store the final, lane-dense output tile of this chunk.
                out_ref[:, pl.ds(start, chunk)] = acc.astype(out_ref.dtype)
        return carry

    # Unrolled chunk loop keeps the whole layer chain in vregs (x: <=8, h: <=16 vregs per
    # chunk at 512 lanes) -> no VMEM round-trip of the wide intermediates.
    lax.fori_loop(0, n_chunks, body, 0, unroll=True)


def fcblock_forward_t(xt, weights, biases, *, block_n=8192, chunk_lanes=512,
                      stream_dtype=None, out_dtype=jnp.float32, vmem_limit_bytes=None):
    """Lane-dense entry point: xt is (in_features, N); returns (out_features, N).

    weights[i]: (out_i, in_i); biases[i]: (out_i,).  `stream_dtype` controls the dtype of
    the HBM-streamed x / weights (use bf16 only if x is bf16 at rest or this call is under
    jit so the cast fuses); accumulation and the bias/ReLU epilogue stay float32.
    """
    in_features, N = xt.shape
    out_dims = tuple(int(w.shape[0]) for w in weights)
    out_features = out_dims[-1]
    stream_dtype = jnp.dtype(stream_dtype) if stream_dtype is not None else jnp.dtype(xt.dtype)
    out_dtype = jnp.dtype(out_dtype)

    # --- block sizing: lane-aligned, >=2 grid blocks when N allows (v7x megacore) ---
    lane = 128
    n_min = max(lane, pl.cdiv(N, lane) * lane)
    chunk = max(lane, (int(chunk_lanes) // lane) * lane)
    chunk = min(chunk, n_min)                                  # small-N: don't over-pad
    block_n = max(chunk, (int(block_n) // chunk) * chunk)
    if n_min >= 2 * chunk:                                     # leave >=2 blocks for 2 TCs
        block_n = min(block_n, max(chunk, (n_min // (2 * chunk)) * chunk))
    block_n = min(block_n, pl.cdiv(n_min, chunk) * chunk)
    n_pad = pl.cdiv(n_min, block_n) * block_n
    n_blocks = n_pad // block_n

    xt = xt.astype(stream_dtype)                               # fuses with pad under jit
    if n_pad != N:
        xt = jnp.pad(xt, ((0, 0), (0, n_pad - N)))             # padded cols hold garbage; sliced off

    # Stack biases into one resident f32 input (fewer tiny streams / DMA descriptors).
    b_all = jnp.concatenate(
        [jnp.asarray(b).reshape(-1).astype(jnp.float32) for b in biases]).reshape(-1, 1)

    args = [xt]
    in_specs = [pl.BlockSpec((in_features, block_n), lambda i: (0, i))]
    for w in weights:
        w = jnp.asarray(w).astype(stream_dtype)                # (out_i, in_i)
        args.append(w)
        # Constant index maps -> weights stay resident in VMEM across grid steps.
        in_specs.append(pl.BlockSpec(w.shape, lambda i: (0, 0)))
    args.append(b_all)
    in_specs.append(pl.BlockSpec(b_all.shape, lambda i: (0, 0)))

    kernel = functools.partial(_fcblock_kernel, out_dims=out_dims, chunk=chunk)

    out_t = pl.pallas_call(
        kernel,
        out_shape=jax.ShapeDtypeStruct((out_features, n_pad), out_dtype),
        grid=(n_blocks,),
        in_specs=in_specs,
        out_specs=pl.BlockSpec((out_features, block_n), lambda i: (0, i)),
        compiler_params=pltpu.CompilerParams(
            dimension_semantics=("parallel",),                 # shard batch axis across TCs
            vmem_limit_bytes=vmem_limit_bytes,
        ),
    )(*args)

    return out_t[:, :N]


@functools.partial(jax.jit,
                   static_argnames=("block_n", "chunk_lanes", "stream_dtype",
                                    "out_dtype", "vmem_limit_bytes"))
def fcblock_forward(x, weights, biases, *, block_n=8192, chunk_lanes=512,
                    stream_dtype=None, out_dtype=jnp.float32, vmem_limit_bytes=None):
    """x: (N, in_features) -> (N, out_features).  Jitted so the transpose / cast / pad /
    un-pad layout plumbing fuses into a single copy around the Pallas kernel."""
    out_t = fcblock_forward_t(jnp.asarray(x).T, weights, biases,
                              block_n=block_n, chunk_lanes=chunk_lanes,
                              stream_dtype=stream_dtype, out_dtype=out_dtype,
                              vmem_limit_bytes=vmem_limit_bytes)
    return out_t.T


def init_fcblock_params(key, in_features, features, out_features):
    """Deterministic init matching FCBlock's structure (init_weights_normal for hidden
    layers, default nn.Linear init for the last, last_nonlinearity=None)."""
    dims = [int(in_features)] + list(features) + [int(out_features)]
    weights, biases = [], []
    n_layers = len(dims) - 1
    for i in range(n_layers):
        fan_in, fan_out = dims[i], dims[i + 1]
        key, kw, kb = jax.random.split(key, 3)
        if i < n_layers - 1:
            # init_weights_normal: kaiming_normal_(mode='fan_out', relu) -> std = sqrt(2/fan_out)
            std = math.sqrt(2.0 / fan_out)
            w = std * jax.random.normal(kw, (fan_out, fan_in), dtype=jnp.float32)
            b = jax.random.uniform(kb, (fan_out,), dtype=jnp.float32, minval=-1.0, maxval=1.0)
        else:
            # default nn.Linear init: U(-1/sqrt(fan_in), 1/sqrt(fan_in)) for weight and bias
            bound = 1.0 / math.sqrt(fan_in)
            w = jax.random.uniform(kw, (fan_out, fan_in), dtype=jnp.float32,
                                   minval=-bound, maxval=bound)
            b = jax.random.uniform(kb, (fan_out,), dtype=jnp.float32,
                                   minval=-bound, maxval=bound)
        weights.append(w)
        biases.append(b)
    return weights, biases


def fcblock_reference(x, weights, biases):
    h = x.astype(jnp.float32)
    n = len(weights)
    for i, (w, b) in enumerate(zip(weights, biases)):
        h = h @ w.T + b
        if i < n - 1:
            h = jnp.maximum(h, 0.0)
    return h


if __name__ == "__main__":
    in_features, features, out_features = 16, [32, 32], 8
    key = jax.random.PRNGKey(0)
    key, kx1 = jax.random.split(key)
    weights, biases = init_fcblock_params(key, in_features, features, out_features)

    # Case 1: small N with padding, single grid block, defaults.
    N1 = 300
    x1 = jax.random.normal(kx1, (N1, in_features), dtype=jnp.float32)
    ref1 = fcblock_reference(x1, weights, biases)
    out1 = jax.block_until_ready(fcblock_forward(x1, weights, biases))
    assert out1.shape == (N1, out_features)
    assert jnp.allclose(out1, ref1, atol=1e-4, rtol=1e-4), "f32 Pallas output mismatch (case 1)"

    # Case 2: multi-block grid (4 blocks) + multi-chunk inner loop (2 chunks/block) + tail pad.
    N2 = 1664
    key, kx2 = jax.random.split(key)
    x2 = jax.random.normal(kx2, (N2, in_features), dtype=jnp.float32)
    ref2 = fcblock_reference(x2, weights, biases)
    out2 = jax.block_until_ready(
        fcblock_forward(x2, weights, biases, block_n=512, chunk_lanes=256))
    assert out2.shape == (N2, out_features)
    assert jnp.allclose(out2, ref2, atol=1e-4, rtol=1e-4), "f32 Pallas output mismatch (case 2)"

    # Case 3: bf16 streaming (cast fuses into the jit'd layout copy), f32 accumulation/output.
    out3 = jax.block_until_ready(
        fcblock_forward(x2, weights, biases, block_n=512, chunk_lanes=256,
                        stream_dtype=jnp.bfloat16))
    assert out3.shape == (N2, out_features)
    assert jnp.allclose(out3, ref2, atol=1e-1, rtol=1e-1), "bf16-stream Pallas output mismatch"

    print("KERNEL_OK")
</pallas_src>

<mosaic_0001>
module attributes {stable_mosaic.version = 11 : i64} {
  func.func @_fcblock_kernel(%arg0: i32, %arg1: memref<16x384xf32, #tpu.memory_space<vmem>>, %arg2: memref<32x16xf32, #tpu.memory_space<vmem>>, %arg3: memref<32x32xf32, #tpu.memory_space<vmem>>, %arg4: memref<8x32xf32, #tpu.memory_space<vmem>>, %arg5: memref<72x1xf32, #tpu.memory_space<vmem>>, %arg6: memref<8x384xf32, #tpu.memory_space<vmem>>) attributes {dimension_semantics = [#tpu.dimension_semantics<parallel>], iteration_bounds = array<i64: 1>, scalar_prefetch = 0 : i64, scratch_operands = 0 : i64, tpu.core_type = #tpu.core_type<tc>, window_params = [{transform_indices = @transform_0, window_bounds = array<i64: 16, 384>}, {pipeline_mode = #tpu.pipeline_mode<synchronous>, transform_indices = @transform_1, window_bounds = array<i64: 32, 16>}, {pipeline_mode = #tpu.pipeline_mode<synchronous>, transform_indices = @transform_2, window_bounds = array<i64: 32, 32>}, {pipeline_mode = #tpu.pipeline_mode<synchronous>, transform_indices = @transform_3, window_bounds = array<i64: 8, 32>}, {pipeline_mode = #tpu.pipeline_mode<synchronous>, transform_indices = @transform_4, window_bounds = array<i64: 72, 1>}, {transform_indices = @transform_5, window_bounds = array<i64: 8, 384>}]} {
    %c0 = arith.constant 0 : index
    %c0_0 = arith.constant 0 : index
    %0 = vector.load %arg2[%c0, %c0_0] : memref<32x16xf32, #tpu.memory_space<vmem>>, vector<32x16xf32>
    %c0_1 = arith.constant 0 : index
    %c0_2 = arith.constant 0 : index
    %1 = vector.load %arg3[%c0_1, %c0_2] : memref<32x32xf32, #tpu.memory_space<vmem>>, vector<32x32xf32>
    %c0_3 = arith.constant 0 : index
    %c0_4 = arith.constant 0 : index
    %2 = vector.load %arg4[%c0_3, %c0_4] : memref<8x32xf32, #tpu.memory_space<vmem>>, vector<8x32xf32>
    %c0_5 = arith.constant 0 : index
    %c0_6 = arith.constant 0 : index
    %3 = vector.load %arg5[%c0_5, %c0_6] : memref<72x1xf32, #tpu.memory_space<vmem>>, vector<72x1xf32>
    %4 = vector.extract_strided_slice %3 {offsets = [0, 0], sizes = [32, 1], strides = [1, 1]} : vector<72x1xf32> to vector<32x1xf32>
    %5 = vector.extract_strided_slice %3 {offsets = [32, 0], sizes = [32, 1], strides = [1, 1]} : vector<72x1xf32> to vector<32x1xf32>
    %6 = vector.extract_strided_slice %3 {offsets = [64, 0], sizes = [8, 1], strides = [1, 1]} : vector<72x1xf32> to vector<8x1xf32>
    %c0_i32 = arith.constant 0 : i32
    %c384_i32 = arith.constant 384 : i32
    %7 = arith.muli %c0_i32, %c384_i32 : i32
    %8 = tpu.assume_multiple %7, 384 : i32
    %c0_7 = arith.constant 0 : index
    %9 = arith.index_cast %8 : i32 to index
    %10 = vector.load %arg1[%c0_7, %9] : memref<16x384xf32, #tpu.memory_space<vmem>>, vector<16x384xf32>
    %cst = arith.constant dense<0.000000e+00> : vector<32x384xf32>
    %11 = tpu.matmul %0, %10, %cst {dimension_numbers = #tpu.dot_dimension_numbers<[1], [0], [0], [1], [0, 0, 1, 1], [], []>} : vector<32x16xf32>, vector<16x384xf32>, vector<32x384xf32> -> vector<32x384xf32>
    %12 = vector.broadcast %4 : vector<32x1xf32> to vector<32x384xf32>
    %13 = arith.addf %11, %12 : vector<32x384xf32>
    %cst_8 = arith.constant 0.000000e+00 : f32
    %14 = vector.broadcast %cst_8 : f32 to vector<32x384xf32>
    %15 = arith.maximumf %13, %14 : vector<32x384xf32>
    %cst_9 = arith.constant dense<0.000000e+00> : vector<32x384xf32>
    %16 = tpu.matmul %1, %15, %cst_9 {dimension_numbers = #tpu.dot_dimension_numbers<[1], [0], [0], [1], [0, 0, 1, 1], [], []>} : vector<32x32xf32>, vector<32x384xf32>, vector<32x384xf32> -> vector<32x384xf32>
    %17 = vector.broadcast %5 : vector<32x1xf32> to vector<32x384xf32>
    %18 = arith.addf %16, %17 : vector<32x384xf32>
    %cst_10 = arith.constant 0.000000e+00 : f32
    %19 = vector.broadcast %cst_10 : f32 to vector<32x384xf32>
    %20 = arith.maximumf %18, %19 : vector<32x384xf32>
    %cst_11 = arith.constant dense<0.000000e+00> : vector<8x384xf32>
    %21 = tpu.matmul %2, %20, %cst_11 {dimension_numbers = #tpu.dot_dimension_numbers<[1], [0], [0], [1], [0, 0, 1, 1], [], []>} : vector<8x32xf32>, vector<32x384xf32>, vector<8x384xf32> -> vector<8x384xf32>
    %22 = vector.broadcast %6 : vector<8x1xf32> to vector<8x384xf32>
    %23 = arith.addf %21, %22 : vector<8x384xf32>
    %c0_12 = arith.constant 0 : index
    %24 = arith.index_cast %8 : i32 to index
    %25 = vector.load %arg6[%c0_12, %24] : memref<8x384xf32, #tpu.memory_space<vmem>>, vector<8x384xf32>
    tpu.vector_store %arg6[%c0_12, %24], %23 {strides = array<i32>} : memref<8x384xf32, #tpu.memory_space<vmem>>, vector<8x384xf32>,
    %c1_i32 = arith.constant 1 : i32
    return
  }
  func.func @transform_0(%arg0: i32) -> (i32, i32) {
    %c0_i32 = arith.constant 0 : i32
    %c0_i32_0 = arith.constant 0 : i32
    return %c0_i32, %arg0 : i32, i32
  }
  func.func @transform_1(%arg0: i32) -> (i32, i32) {
    %c0_i32 = arith.constant 0 : i32
    %c0_i32_0 = arith.constant 0 : i32
    %c0_i32_1 = arith.constant 0 : i32
    return %c0_i32, %c0_i32_0 : i32, i32
  }
  func.func @transform_2(%arg0: i32) -> (i32, i32) {
    %c0_i32 = arith.constant 0 : i32
    %c0_i32_0 = arith.constant 0 : i32
    %c0_i32_1 = arith.constant 0 : i32
    return %c0_i32, %c0_i32_0 : i32, i32
  }
  func.func @transform_3(%arg0: i32) -> (i32, i32) {
    %c0_i32 = arith.constant 0 : i32
    %c0_i32_0 = arith.constant 0 : i32
    %c0_i32_1 = arith.constant 0 : i32
    return %c0_i32, %c0_i32_0 : i32, i32
  }
  func.func @transform_4(%arg0: i32) -> (i32, i32) {
    %c0_i32 = arith.constant 0 : i32
    %c0_i32_0 = arith.constant 0 : i32
    %c0_i32_1 = arith.constant 0 : i32
    return %c0_i32, %c0_i32_0 : i32, i32
  }
  func.func @transform_5(%arg0: i32) -> (i32, i32) {
    %c0_i32 = arith.constant 0 : i32
    %c0_i32_0 = arith.constant 0 : i32
    return %c0_i32, %arg0 : i32, i32
  }
}

</mosaic_0001>

<llo_original>
// kernel: fcblock_forward.1
$region0: #{fcblock_forward.1}
  #allocation0 [shape = 'u32[]', space=smem, size = 0x4, offset = 0x4, fixed_abs, tag = 'smem constant byte address 0x4 - core index']
  #allocation1 [shape = 'u32[72,128]{1,0:T(1,128)}', space=vmem, size = 0x9000, scoped, tag = 'internal scratch']
  %s0 = inlined_call_operand.vmem [shape: f32[16,384], index: 0, kind: input, shape index: {}]
  %s1 = inlined_call_operand.vmem [shape: f32[32,16], index: 1, kind: input, shape index: {}]
  %s2 = inlined_call_operand.vmem [shape: f32[32,32], index: 2, kind: input, shape index: {}]
  %s3 = inlined_call_operand.vmem [shape: f32[8,32], index: 3, kind: input, shape index: {}]
  %s4 = inlined_call_operand.vmem [shape: f32[72,1], index: 4, kind: input, shape index: {}]
  %s5 = inlined_call_operand.vmem [shape: f32[8,384], index: 5, kind: output, shape index: {}]
  %s6 = sld [smem:[#allocation0]]
  $region30: #{fcblock_forward.1} parent=0
    _
  %s8 = ssub.s32 1, %s6
  %s9 = scalar_select 0, %s8, %s6
  // Predicated region
  $region2: #{fcblock_forward.1} parent=0 // pred_check
    _
  $region3: #{fcblock_forward.1} parent=0 // pred_check_branch
    %11 = sbr.rel (0) target = $region5
  $region4: #{fcblock_forward.1} parent=0 // pred_region
    _
  $region5: #{fcblock_forward.1} parent=0 // pred_fallthru
    _
  // Predicated region
  $region6: #{fcblock_forward.1} parent=0 // pred_check
    _
  $region7: #{fcblock_forward.1} parent=0 // pred_check_branch
    %13 = sbr.rel (0) target = $region9
  $region8: #{fcblock_forward.1} parent=0 // pred_region
    _
  $region9: #{fcblock_forward.1} parent=0 // pred_fallthru
    _
  // Predicated region
  $region10: #{fcblock_forward.1} parent=0 // pred_check
    _
  $region11: #{fcblock_forward.1} parent=0 // pred_check_branch
    %15 = sbr.rel (0) target = $region13
  $region12: #{fcblock_forward.1} parent=0 // pred_region
    _
  $region13: #{fcblock_forward.1} parent=0 // pred_fallthru
    _
  // Predicated region
  $region14: #{fcblock_forward.1} parent=0 // pred_check
    _
  $region15: #{fcblock_forward.1} parent=0 // pred_check_branch
    %17 = sbr.rel (0) target = $region17
  $region16: #{fcblock_forward.1} parent=0 // pred_region
    _
  $region17: #{fcblock_forward.1} parent=0 // pred_fallthru
    _
  // Predicated region
  $region18: #{fcblock_forward.1} parent=0 // pred_check
    _
  $region19: #{fcblock_forward.1} parent=0 // pred_check_branch
    %19 = sbr.rel (0) target = $region21
  $region20: #{fcblock_forward.1} parent=0 // pred_region
    _
  $region21: #{fcblock_forward.1} parent=0 // pred_fallthru
    _
  %v20 = vld [vmem:[%s1] sm:$0xff]
  %v21 = vld [vmem:[%s1 + $0x8] sm:$0xff]
  %v22 = vld [vmem:[%s1 + $0x10] sm:$0xff]
  %v23 = vld [vmem:[%s1 + $0x18] sm:$0xff]
  %v24 = vld [vmem:[%s2] sm:$0xff]
  %v25 = vld [vmem:[%s2 + $0x8] sm:$0xff]
  %v26 = vld [vmem:[%s2 + $0x10] sm:$0xff]
  %v27 = vld [vmem:[%s2 + $0x18] sm:$0xff]
  %v28 = vld [vmem:[%s3] sm:$0xff]
  %v29 = vld [vmem:[%s4] sm:$0xff]
  %v30 = vld [vmem:[%s4 + $0x8] sm:$0xff]
  %v31 = vld [vmem:[%s4 + $0x10] sm:$0xff]
  %v32 = vld [vmem:[%s4 + $0x18] sm:$0xff]
  %v33 = vld [vmem:[%s4 + $0x20] sm:$0xff]
  %v34 = vld [vmem:[%s4 + $0x28] sm:$0xff]
  %v35 = vld [vmem:[%s4 + $0x30] sm:$0xff]
  %v36 = vld [vmem:[%s4 + $0x38] sm:$0xff]
  %v37 = vld [vmem:[%s4 + $0x40] sm:$0xff]
  %v38 = vld [vmem:[%s0] sm:$0xff]
  %v39 = vld [vmem:[%s0 + $0x8] sm:$0xff]
  %v40 = vld [vmem:[%s0 + $0x10] sm:$0xff]
  %v41 = vld [vmem:[%s0 + $0x18] sm:$0xff]
  %v42 = vld [vmem:[%s0 + $0x20] sm:$0xff]
  %v43 = vld [vmem:[%s0 + $0x28] sm:$0xff]
  %45 = vset.pattern.permute.xlu0 0
  %46 = vperm.xlu0 %45, %v29
  %v47 = vpop.permute.xlu0 %46
  %50 = vset.pattern.permute.xlu0 0
  %51 = vperm.xlu0 %50, %v30
  %v52 = vpop.permute.xlu0 %51
  %55 = vset.pattern.permute.xlu0 0
  %56 = vperm.xlu0 %55, %v31
  %v57 = vpop.permute.xlu0 %56
  %60 = vset.pattern.permute.xlu0 0
  %61 = vperm.xlu0 %60, %v32
  %v62 = vpop.permute.xlu0 %61
  %vm64 = vcmask 130048
  %v66 = vsel %vm64, %v20, 0
  %v69 = vsel %vm64, %v21, 0
  %v72 = vsel %vm64, %v22, 0
  %v75 = vsel %vm64, %v23, 0
  %77 = vmatpush.msra.mxu0 0.0
  %78 = vmatpush.msra.mxu0 0.0
  %79 = vmatpush.msra.mxu0 0.0
  %80 = vmatpush.msra.mxu0 0.0
  %81 = vmatpush.msra.mxu0 0.0
  %82 = vmatpush.msra.mxu0 0.0
  %83 = vmatpush.msra.mxu0 0.0
  %84 = vmatpush.msra.mxu0 0.0
  %85 = vmatpush.msra.mxu0 0.0
  %86 = vmatpush.msra.mxu0 0.0
  %87 = vmatpush.msra.mxu0 0.0
  %88 = vmatpush.msra.mxu0 0.0
  %89 = vmatpush.msra.mxu0 0.0
  %90 = vmatpush.msra.mxu0 0.0
  %91 = vmatpush.msra.mxu0 %v41
  %92 = vmatpush.msra.mxu0 %v38
  %93 = vmatmul.f32.gmra.mxu0 %v66
  %v94 = vpop.f32.mrf.mxu0
  %v95 = vadd.f32 %v47, %v94
  %96 = vmatmul.f32.gmra.mxu0 %v69
  %v97 = vpop.f32.mrf.mxu0
  %v98 = vadd.f32 %v52, %v97
  %99 = vmatmul.f32.gmra.mxu0 %v72
  %v100 = vpop.f32.mrf.mxu0
  %v101 = vadd.f32 %v57, %v100
  %102 = vmatmul.f32.gmra.mxu0 %v75
  %v103 = vpop.f32.mrf.mxu0
  %v104 = vadd.f32 %v62, %v103
  %105 = vdwg.mxu0
  %106 = vmatpush.msra.mxu0 0.0
  %107 = vmatpush.msra.mxu0 0.0
  %108 = vmatpush.msra.mxu0 0.0
  %109 = vmatpush.msra.mxu0 0.0
  %110 = vmatpush.msra.mxu0 0.0
  %111 = vmatpush.msra.mxu0 0.0
  %112 = vmatpush.msra.mxu0 0.0
  %113 = vmatpush.msra.mxu0 0.0
  %114 = vmatpush.msra.mxu0 0.0
  %115 = vmatpush.msra.mxu0 0.0
  %116 = vmatpush.msra.mxu0 0.0
  %117 = vmatpush.msra.mxu0 0.0
  %118 = vmatpush.msra.mxu0 0.0
  %119 = vmatpush.msra.mxu0 0.0
  %120 = vmatpush.msra.mxu0 %v42
  %121 = vmatpush.msra.mxu0 %v39
  %122 = vmatmul.f32.gmra.mxu0 %v66
  %v123 = vpop.f32.mrf.mxu0
  %v124 = vadd.f32 %v47, %v123
  %125 = vmatmul.f32.gmra.mxu0 %v69
  %v126 = vpop.f32.mrf.mxu0
  %v127 = vadd.f32 %v52, %v126
  %128 = vmatmul.f32.gmra.mxu0 %v72
  %v129 = vpop.f32.mrf.mxu0
  %v130 = vadd.f32 %v57, %v129
  %131 = vmatmul.f32.gmra.mxu0 %v75
  %v132 = vpop.f32.mrf.mxu0
  %v133 = vadd.f32 %v62, %v132
  %134 = vdwg.mxu0
  %135 = vmatpush.msra.mxu0 0.0
  %136 = vmatpush.msra.mxu0 0.0
  %137 = vmatpush.msra.mxu0 0.0
  %138 = vmatpush.msra.mxu0 0.0
  %139 = vmatpush.msra.mxu0 0.0
  %140 = vmatpush.msra.mxu0 0.0
  %141 = vmatpush.msra.mxu0 0.0
  %142 = vmatpush.msra.mxu0 0.0
  %143 = vmatpush.msra.mxu0 0.0
  %144 = vmatpush.msra.mxu0 0.0
  %145 = vmatpush.msra.mxu0 0.0
  %146 = vmatpush.msra.mxu0 0.0
  %147 = vmatpush.msra.mxu0 0.0
  %148 = vmatpush.msra.mxu0 0.0
  %149 = vmatpush.msra.mxu0 %v43
  %150 = vmatpush.msra.mxu0 %v40
  %151 = vmatmul.f32.gmra.mxu0 %v66
  %v152 = vpop.f32.mrf.mxu0
  %v153 = vadd.f32 %v47, %v152
  %154 = vmatmul.f32.gmra.mxu0 %v69
  %v155 = vpop.f32.mrf.mxu0
  %v156 = vadd.f32 %v52, %v155
  %157 = vmatmul.f32.gmra.mxu0 %v72
  %v158 = vpop.f32.mrf.mxu0
  %v159 = vadd.f32 %v57, %v158
  %160 = vmatmul.f32.gmra.mxu0 %v75
  %v161 = vpop.f32.mrf.mxu0
  %v162 = vadd.f32 %v62, %v161
  %163 = vdwg.mxu0
  %v164 = vmax.f32 %v95, 0.0
  %v165 = vmax.f32 %v124, 0.0
  %v166 = vmax.f32 %v153, 0.0
  %v167 = vmax.f32 %v98, 0.0
  %v168 = vmax.f32 %v127, 0.0
  %v169 = vmax.f32 %v156, 0.0
  %v170 = vmax.f32 %v101, 0.0
  %v171 = vmax.f32 %v130, 0.0
  %v172 = vmax.f32 %v159, 0.0
  %v173 = vmax.f32 %v104, 0.0
  %v174 = vmax.f32 %v133, 0.0
  %v175 = vmax.f32 %v162, 0.0
  %177 = vset.pattern.permute.xlu0 0
  %178 = vperm.xlu0 %177, %v33
  %v179 = vpop.permute.xlu0 %178
  %182 = vset.pattern.permute.xlu0 0
  %183 = vperm.xlu0 %182, %v34
  %v184 = vpop.permute.xlu0 %183
  %187 = vset.pattern.permute.xlu0 0
  %188 = vperm.xlu0 %187, %v35
  %v189 = vpop.permute.xlu0 %188
  %192 = vset.pattern.permute.xlu0 0
  %193 = vperm.xlu0 %192, %v36
  %v194 = vpop.permute.xlu0 %193
  %vm196 = vcmask 261120
  %v198 = vsel %vm196, %v24, 0
  %v201 = vsel %vm196, %v25, 0
  %v204 = vsel %vm196, %v26, 0
  %v207 = vsel %vm196, %v27, 0
  %209 = vmatpush.msra.mxu0 0.0
  %210 = vmatpush.msra.mxu0 0.0
  %211 = vmatpush.msra.mxu0 0.0
  %212 = vmatpush.msra.mxu0 0.0
  %213 = vmatpush.msra.mxu0 0.0
  %214 = vmatpush.msra.mxu0 0.0
  %215 = vmatpush.msra.mxu0 0.0
  %216 = vmatpush.msra.mxu0 0.0
  %217 = vmatpush.msra.mxu0 0.0
  %218 = vmatpush.msra.mxu0 0.0
  %219 = vmatpush.msra.mxu0 0.0
  %220 = vmatpush.msra.mxu0 0.0
  %221 = vmatpush.msra.mxu0 %v173
  %222 = vmatpush.msra.mxu0 %v170
  %223 = vmatpush.msra.mxu0 %v167
  %224 = vmatpush.msra.mxu0 %v164
  %225 = vmatmul.f32.gmra.mxu0 %v198
  %v226 = vpop.f32.mrf.mxu0
  %v227 = vadd.f32 %v179, %v226
  %228 = vmatmul.f32.gmra.mxu0 %v201
  %v229 = vpop.f32.mrf.mxu0
  %v230 = vadd.f32 %v184, %v229
  %231 = vmatmul.f32.gmra.mxu0 %v204
  %v232 = vpop.f32.mrf.mxu0
  %v233 = vadd.f32 %v189, %v232
  %234 = vmatmul.f32.gmra.mxu0 %v207
  %v235 = vpop.f32.mrf.mxu0
  %v236 = vadd.f32 %v194, %v235
  %237 = vdwg.mxu0
  %238 = vmatpush.msra.mxu0 0.0
  %239 = vmatpush.msra.mxu0 0.0
  %240 = vmatpush.msra.mxu0 0.0
  %241 = vmatpush.msra.mxu0 0.0
  %242 = vmatpush.msra.mxu0 0.0
  %243 = vmatpush.msra.mxu0 0.0
  %244 = vmatpush.msra.mxu0 0.0
  %245 = vmatpush.msra.mxu0 0.0
  %246 = vmatpush.msra.mxu0 0.0
  %247 = vmatpush.msra.mxu0 0.0
  %248 = vmatpush.msra.mxu0 0.0
  %249 = vmatpush.msra.mxu0 0.0
  %250 = vmatpush.msra.mxu0 %v174
  %251 = vmatpush.msra.mxu0 %v171
  %252 = vmatpush.msra.mxu0 %v168
  %253 = vmatpush.msra.mxu0 %v165
  %254 = vmatmul.f32.gmra.mxu0 %v198
  %v255 = vpop.f32.mrf.mxu0
  %v256 = vadd.f32 %v179, %v255
  %257 = vmatmul.f32.gmra.mxu0 %v201
  %v258 = vpop.f32.mrf.mxu0
  %v259 = vadd.f32 %v184, %v258
  %260 = vmatmul.f32.gmra.mxu0 %v204
  %v261 = vpop.f32.mrf.mxu0
  %v262 = vadd.f32 %v189, %v261
  %263 = vmatmul.f32.gmra.mxu0 %v207
  %v264 = vpop.f32.mrf.mxu0
  %v265 = vadd.f32 %v194, %v264
  %266 = vdwg.mxu0
  %267 = vmatpush.msra.mxu0 0.0
  %268 = vmatpush.msra.mxu0 0.0
  %269 = vmatpush.msra.mxu0 0.0
  %270 = vmatpush.msra.mxu0 0.0
  %271 = vmatpush.msra.mxu0 0.0
  %272 = vmatpush.msra.mxu0 0.0
  %273 = vmatpush.msra.mxu0 0.0
  %274 = vmatpush.msra.mxu0 0.0
  %275 = vmatpush.msra.mxu0 0.0
  %276 = vmatpush.msra.mxu0 0.0
  %277 = vmatpush.msra.mxu0 0.0
  %278 = vmatpush.msra.mxu0 0.0
  %279 = vmatpush.msra.mxu0 %v175
  %280 = vmatpush.msra.mxu0 %v172
  %281 = vmatpush.msra.mxu0 %v169
  %282 = vmatpush.msra.mxu0 %v166
  %283 = vmatmul.f32.gmra.mxu0 %v198
  %v284 = vpop.f32.mrf.mxu0
  %v285 = vadd.f32 %v179, %v284
  %286 = vmatmul.f32.gmra.mxu0 %v201
  %v287 = vpop.f32.mrf.mxu0
  %v288 = vadd.f32 %v184, %v287
  %289 = vmatmul.f32.gmra.mxu0 %v204
  %v290 = vpop.f32.mrf.mxu0
  %v291 = vadd.f32 %v189, %v290
  %292 = vmatmul.f32.gmra.mxu0 %v207
  %v293 = vpop.f32.mrf.mxu0
  %v294 = vadd.f32 %v194, %v293
  %295 = vdwg.mxu0
  %v296 = vmax.f32 %v227, 0.0
  %v297 = vmax.f32 %v256, 0.0
  %v298 = vmax.f32 %v285, 0.0
  %v299 = vmax.f32 %v230, 0.0
  %v300 = vmax.f32 %v259, 0.0
  %v301 = vmax.f32 %v288, 0.0
  %v302 = vmax.f32 %v233, 0.0
  %v303 = vmax.f32 %v262, 0.0
  %v304 = vmax.f32 %v291, 0.0
  %v305 = vmax.f32 %v236, 0.0
  %v306 = vmax.f32 %v265, 0.0
  %v307 = vmax.f32 %v294, 0.0
  %309 = vset.pattern.permute.xlu0 0
  %310 = vperm.xlu0 %309, %v37
  %v311 = vpop.permute.xlu0 %310
  %v314 = vsel %vm196, %v28, 0
  %316 = vmatpush.msra.mxu0 0.0
  %317 = vmatpush.msra.mxu0 0.0
  %318 = vmatpush.msra.mxu0 0.0
  %319 = vmatpush.msra.mxu0 0.0
  %320 = vmatpush.msra.mxu0 0.0
  %321 = vmatpush.msra.mxu0 0.0
  %322 = vmatpush.msra.mxu0 0.0
  %323 = vmatpush.msra.mxu0 0.0
  %324 = vmatpush.msra.mxu0 0.0
  %325 = vmatpush.msra.mxu0 0.0
  %326 = vmatpush.msra.mxu0 0.0
  %327 = vmatpush.msra.mxu0 0.0
  %328 = vmatpush.msra.mxu0 %v305
  %329 = vmatpush.msra.mxu0 %v302
  %330 = vmatpush.msra.mxu0 %v299
  %331 = vmatpush.msra.mxu0 %v296
  %332 = vmatmul.f32.gmra.mxu0 %v314
  %v333 = vpop.f32.mrf.mxu0
  %v334 = vadd.f32 %v311, %v333
  %335 = vdwg.mxu0
  %336 = vmatpush.msra.mxu0 0.0
  %337 = vmatpush.msra.mxu0 0.0
  %338 = vmatpush.msra.mxu0 0.0
  %339 = vmatpush.msra.mxu0 0.0
  %340 = vmatpush.msra.mxu0 0.0
  %341 = vmatpush.msra.mxu0 0.0
  %342 = vmatpush.msra.mxu0 0.0
  %343 = vmatpush.msra.mxu0 0.0
  %344 = vmatpush.msra.mxu0 0.0
  %345 = vmatpush.msra.mxu0 0.0
  %346 = vmatpush.msra.mxu0 0.0
  %347 = vmatpush.msra.mxu0 0.0
  %348 = vmatpush.msra.mxu0 %v306
  %349 = vmatpush.msra.mxu0 %v303
  %350 = vmatpush.msra.mxu0 %v300
  %351 = vmatpush.msra.mxu0 %v297
  %352 = vmatmul.f32.gmra.mxu0 %v314
  %v353 = vpop.f32.mrf.mxu0
  %v354 = vadd.f32 %v311, %v353
  %355 = vdwg.mxu0
  %356 = vmatpush.msra.mxu0 0.0
  %357 = vmatpush.msra.mxu0 0.0
  %358 = vmatpush.msra.mxu0 0.0
  %359 = vmatpush.msra.mxu0 0.0
  %360 = vmatpush.msra.mxu0 0.0
  %361 = vmatpush.msra.mxu0 0.0
  %362 = vmatpush.msra.mxu0 0.0
  %363 = vmatpush.msra.mxu0 0.0
  %364 = vmatpush.msra.mxu0 0.0
  %365 = vmatpush.msra.mxu0 0.0
  %366 = vmatpush.msra.mxu0 0.0
  %367 = vmatpush.msra.mxu0 0.0
  %368 = vmatpush.msra.mxu0 %v307
  %369 = vmatpush.msra.mxu0 %v304
  %370 = vmatpush.msra.mxu0 %v301
  %371 = vmatpush.msra.mxu0 %v298
  %372 = vmatmul.f32.gmra.mxu0 %v314
  %v373 = vpop.f32.mrf.mxu0
  %v374 = vadd.f32 %v311, %v373
  %375 = vdwg.mxu0
  %376 = vst [vmem:[%s5] sm:$0xff] %v334
  %377 = vst [vmem:[%s5 + $0x8] sm:$0xff] %v354
  %378 = vst [vmem:[%s5 + $0x10] sm:$0xff] %v374
  // Predicated region
  $region22: #{fcblock_forward.1} parent=0 // pred_check
    _
  $region23: #{fcblock_forward.1} parent=0 // pred_check_branch
    %380 = sbr.rel (0) target = $region25
  $region24: #{fcblock_forward.1} parent=0 // pred_region
    _
  $region25: #{fcblock_forward.1} parent=0 // pred_fallthru
    _
  // Predicated region
  $region26: #{fcblock_forward.1} parent=0 // pred_check
    _
  $region27: #{fcblock_forward.1} parent=0 // pred_check_branch
    %382 = sbr.rel (0) target = $region29
  $region28: #{fcblock_forward.1} parent=0 // pred_region
    _
  $region29: #{fcblock_forward.1} parent=0 // pred_fallthru
    _

</llo_original>
